<compile_context>
chip_gen: v7x
topology: tpu7x:2x2x1
jax: 0.10.0
libtpu: 0.0.40
codegen_flags: <defaults>
</compile_context>

<pallas_src>
import jax
import jax.numpy as jnp
from jax.experimental import pallas as pl
from jax.experimental.pallas import tpu as pltpu


def mean_max_kernel(x_ref, mask_ref, out_ref, sum_acc, cnt_acc, max_acc):
    # x_ref:    (TB, TS, H)  native dtype
    # mask_ref: (TB, TS, 1)  float32 (0/1)
    # out_ref:  (TB, 2,  H)  native dtype   [slot 0 = mean, slot 1 = max]
    # sum_acc:  (TB, 1, H) f32, cnt_acc: (TB, 1, 1) f32, max_acc: (TB, 1, H) f32
    sk = pl.program_id(1)

    @pl.when(sk == 0)
    def _init():
        sum_acc[...] = jnp.zeros_like(sum_acc)
        cnt_acc[...] = jnp.zeros_like(cnt_acc)
        # -inf init: the running max is always overwritten by real tile maxima
        # (masked positions contribute exactly -10000.0, matching masked_fill).
        max_acc[...] = jnp.full_like(max_acc, -jnp.inf)

    x = x_ref[...].astype(jnp.float32)            # (TB, TS, H) accumulate in f32
    m = mask_ref[...]                             # (TB, TS, 1)
    mb = jnp.broadcast_to(m, x.shape)             # materialize broadcast ONCE

    # masked sum / count for the mean
    sum_acc[...] += jnp.sum(x * mb, axis=1, keepdims=True)      # (TB, 1, H)
    cnt_acc[...] += jnp.sum(m, axis=1, keepdims=True)           # (TB, 1, 1)

    # masked max (masked positions -> -10000.0, matching torch masked fill)
    neg_x = jnp.where(mb == 0.0, jnp.float32(-10000.0), x)
    max_acc[...] = jnp.maximum(max_acc[...],
                               jnp.max(neg_x, axis=1, keepdims=True))

    @pl.when(sk == pl.num_programs(1) - 1)
    def _finalize():
        denom = jnp.maximum(cnt_acc[...], jnp.float32(1e-9))    # clamp(min=1e-9)
        out_ref[:, 0:1, :] = (sum_acc[...] / denom).astype(out_ref.dtype)
        out_ref[:, 1:2, :] = max_acc[...].astype(out_ref.dtype)


def _pick_tiles(B, S, H, itemsize, target_bytes=4 << 20):
    """Choose (TB, TS): batch rows / sequence length per block (~4 MiB x-buffer)."""
    row_bytes = S * H * itemsize
    # Batch tiling: largest divisor of B whose (TB, S, H) slab fits the budget,
    # but keep >= 2 batch tiles when B allows it (megacore / 2-TC sharding).
    tb = 1
    for cand in range(1, B + 1):
        if B % cand:
            continue
        if cand * row_bytes > target_bytes:
            continue
        if B >= 2 and B // cand < 2:
            continue
        tb = cand

    ts = S
    if tb * S * H * itemsize > target_bytes:
        # Even one batch row is too big: tile the sequence axis instead.
        # TS must be a multiple of 8 (sublane rule) that divides S.
        tb = 1
        best = None
        for cand in range(8, S + 1, 8):
            if S % cand == 0 and cand * H * itemsize <= target_bytes:
                best = cand
        if best is not None:
            ts = best
    return tb, ts


def mean_max_pooling(x, attention_mask, *, tb=None, ts=None):
    """x: (B, S, H); attention_mask: (B, S) any numeric dtype.
    Returns (B, 2H) in x.dtype: [masked mean || masked max]."""
    B, S, H = x.shape
    mask = attention_mask.astype(jnp.float32).reshape(B, S, 1)

    TB, TS = _pick_tiles(B, S, H, jnp.dtype(x.dtype).itemsize)
    if tb is not None:
        TB = tb
    if ts is not None:
        TS = ts
    grid = (B // TB, S // TS)

    out = pl.pallas_call(
        mean_max_kernel,
        out_shape=jax.ShapeDtypeStruct((B, 2, H), x.dtype),
        grid_spec=pltpu.PrefetchScalarGridSpec(
            num_scalar_prefetch=0,
            grid=grid,
            in_specs=[
                pl.BlockSpec((TB, TS, H), lambda b, sk: (b, sk, 0)),
                pl.BlockSpec((TB, TS, 1), lambda b, sk: (b, sk, 0)),
            ],
            out_specs=pl.BlockSpec((TB, 2, H), lambda b, sk: (b, 0, 0)),
            scratch_shapes=[
                pltpu.VMEM((TB, 1, H), jnp.float32),   # sum accumulator
                pltpu.VMEM((TB, 1, 1), jnp.float32),   # mask-count accumulator
                pltpu.VMEM((TB, 1, H), jnp.float32),   # max accumulator
            ],
        ),
        compiler_params=pltpu.CompilerParams(
            dimension_semantics=("parallel", "arbitrary"),
            vmem_limit_bytes=32 * 1024 * 1024,
        ),
    )(x, mask)

    # (B, 2, H) -> (B, 2H): contiguous reshape (mean block then max block per row).
    return out.reshape(B, 2 * H)


def mean_max_pooling_ref(x, attention_mask):
    """Pure-JAX reference mirroring the PyTorch forward."""
    m = attention_mask.astype(jnp.float32)[..., None]            # (B, S, 1)
    xf = x.astype(jnp.float32)
    sum_emb = jnp.sum(xf * m, axis=1)                            # (B, H)
    sum_mask = jnp.maximum(jnp.sum(m, axis=1), 1e-9)             # clamp(min=1e-9)
    mean_emb = sum_emb / sum_mask
    neg_x = jnp.where(m == 0.0, -10000.0, xf)
    max_emb = jnp.max(neg_x, axis=1)
    return jnp.concatenate([mean_emb, max_emb], axis=1).astype(x.dtype)


if __name__ == "__main__":
    key = jax.random.PRNGKey(0)

    # --- test 1: small shape implied by the module (B=2, S=8, H=32) ---
    B, S, H = 2, 8, 32
    x = jax.random.normal(key, (B, S, H), dtype=jnp.float32)
    lengths = jnp.array([6, 3], dtype=jnp.int32)                 # padded rows
    attention_mask = (jnp.arange(S)[None, :] < lengths[:, None]).astype(jnp.int32)

    out = jax.block_until_ready(mean_max_pooling(x, attention_mask))
    ref = mean_max_pooling_ref(x, attention_mask)
    assert out.shape == (B, 2 * H)
    assert out.dtype == x.dtype
    assert jnp.allclose(out, ref, atol=1e-5, rtol=1e-5)

    # --- test 2: exercise the multi-seq-tile reduction path explicitly ---
    B2, S2, H2 = 4, 32, 128
    k1, k2 = jax.random.split(key)
    x2 = jax.random.normal(k1, (B2, S2, H2), dtype=jnp.float32)
    lengths2 = jnp.array([32, 17, 1, 9], dtype=jnp.int32)
    mask2 = (jnp.arange(S2)[None, :] < lengths2[:, None]).astype(jnp.int32)
    out2 = jax.block_until_ready(mean_max_pooling(x2, mask2, tb=2, ts=8))
    ref2 = mean_max_pooling_ref(x2, mask2)
    assert jnp.allclose(out2, ref2, atol=1e-5, rtol=1e-5)

    print("KERNEL_OK")
</pallas_src>

<mosaic_0001>
module attributes {stable_mosaic.version = 11 : i64} {
  func.func @mean_max_kernel(%arg0: i32, %arg1: i32, %arg2: memref<1x8x32xf32, #tpu.memory_space<vmem>>, %arg3: memref<1x8x1xf32, #tpu.memory_space<vmem>>, %arg4: memref<1x2x32xf32, #tpu.memory_space<vmem>>, %arg5: memref<1x1x32xf32, #tpu.memory_space<vmem>>, %arg6: memref<1x1x1xf32, #tpu.memory_space<vmem>>, %arg7: memref<1x1x32xf32, #tpu.memory_space<vmem>>) attributes {dimension_semantics = [#tpu.dimension_semantics<parallel>, #tpu.dimension_semantics<arbitrary>], iteration_bounds = array<i64: 2, 1>, scalar_prefetch = 0 : i64, scratch_operands = 3 : i64, tpu.core_type = #tpu.core_type<tc>, window_params = [{transform_indices = @transform_0, window_bounds = array<i64: 1, 8, 32>}, {transform_indices = @transform_1, window_bounds = array<i64: 1, 8, 1>}, {transform_indices = @transform_2, window_bounds = array<i64: 1, 2, 32>}]} {
    %c0_i32 = arith.constant 0 : i32
    %0 = arith.cmpi eq, %arg1, %c0_i32 : i32
    %1 = arith.extui %0 : i1 to i32
    %c0_i32_0 = arith.constant 0 : i32
    %2 = arith.cmpi ne, %1, %c0_i32_0 : i32
    scf.if %2 {
      %cst_30 = arith.constant 0.000000e+00 : f32
      %30 = vector.broadcast %cst_30 : f32 to vector<1x1x32xf32>
      %c0_31 = arith.constant 0 : index
      %c0_32 = arith.constant 0 : index
      %c0_33 = arith.constant 0 : index
      %31 = vector.load %arg5[%c0_31, %c0_32, %c0_33] : memref<1x1x32xf32, #tpu.memory_space<vmem>>, vector<1x1x32xf32>
      tpu.vector_store %arg5[%c0_31, %c0_32, %c0_33], %30 {strides = array<i32>} : memref<1x1x32xf32, #tpu.memory_space<vmem>>, vector<1x1x32xf32>,
      %cst_34 = arith.constant 0.000000e+00 : f32
      %32 = vector.broadcast %cst_34 : f32 to vector<1x1x1xf32>
      %c0_35 = arith.constant 0 : index
      %c0_36 = arith.constant 0 : index
      %c0_37 = arith.constant 0 : index
      %33 = vector.load %arg6[%c0_35, %c0_36, %c0_37] : memref<1x1x1xf32, #tpu.memory_space<vmem>>, vector<1x1x1xf32>
      tpu.vector_store %arg6[%c0_35, %c0_36, %c0_37], %32 {strides = array<i32>} : memref<1x1x1xf32, #tpu.memory_space<vmem>>, vector<1x1x1xf32>,
      %cst_38 = arith.constant 0xFF800000 : f32
      %34 = vector.broadcast %cst_38 : f32 to vector<1x1x32xf32>
      %c0_39 = arith.constant 0 : index
      %c0_40 = arith.constant 0 : index
      %c0_41 = arith.constant 0 : index
      %35 = vector.load %arg7[%c0_39, %c0_40, %c0_41] : memref<1x1x32xf32, #tpu.memory_space<vmem>>, vector<1x1x32xf32>
      tpu.vector_store %arg7[%c0_39, %c0_40, %c0_41], %34 {strides = array<i32>} : memref<1x1x32xf32, #tpu.memory_space<vmem>>, vector<1x1x32xf32>,
    } else {
    }
    %c0 = arith.constant 0 : index
    %c0_1 = arith.constant 0 : index
    %c0_2 = arith.constant 0 : index
    %3 = vector.load %arg2[%c0, %c0_1, %c0_2] : memref<1x8x32xf32, #tpu.memory_space<vmem>>, vector<1x8x32xf32>
    %c0_3 = arith.constant 0 : index
    %c0_4 = arith.constant 0 : index
    %c0_5 = arith.constant 0 : index
    %4 = vector.load %arg3[%c0_3, %c0_4, %c0_5] : memref<1x8x1xf32, #tpu.memory_space<vmem>>, vector<1x8x1xf32>
    %5 = vector.shape_cast %4 : vector<1x8x1xf32> to vector<1x8x1xf32>
    %6 = vector.broadcast %5 : vector<1x8x1xf32> to vector<1x8x32xf32>
    %c0_6 = arith.constant 0 : index
    %c0_7 = arith.constant 0 : index
    %c0_8 = arith.constant 0 : index
    %7 = vector.load %arg5[%c0_6, %c0_7, %c0_8] : memref<1x1x32xf32, #tpu.memory_space<vmem>>, vector<1x1x32xf32>
    %8 = arith.mulf %3, %6 : vector<1x8x32xf32>
    %cst = arith.constant dense<0.000000e+00> : vector<1x32xf32>
    %9 = vector.multi_reduction <add>, %8, %cst [1] : vector<1x8x32xf32> to vector<1x32xf32>
    %10 = vector.shape_cast %9 : vector<1x32xf32> to vector<1x1x32xf32>
    %11 = arith.addf %7, %10 : vector<1x1x32xf32>
    %c0_9 = arith.constant 0 : index
    %c0_10 = arith.constant 0 : index
    %c0_11 = arith.constant 0 : index
    %12 = vector.load %arg5[%c0_9, %c0_10, %c0_11] : memref<1x1x32xf32, #tpu.memory_space<vmem>>, vector<1x1x32xf32>
    tpu.vector_store %arg5[%c0_9, %c0_10, %c0_11], %11 {strides = array<i32>} : memref<1x1x32xf32, #tpu.memory_space<vmem>>, vector<1x1x32xf32>,
    %c0_12 = arith.constant 0 : index
    %c0_13 = arith.constant 0 : index
    %c0_14 = arith.constant 0 : index
    %13 = vector.load %arg6[%c0_12, %c0_13, %c0_14] : memref<1x1x1xf32, #tpu.memory_space<vmem>>, vector<1x1x1xf32>
    %cst_15 = arith.constant dense<0.000000e+00> : vector<1x1xf32>
    %14 = vector.multi_reduction <add>, %4, %cst_15 [1] : vector<1x8x1xf32> to vector<1x1xf32>
    %15 = vector.shape_cast %14 : vector<1x1xf32> to vector<1x1x1xf32>
    %16 = arith.addf %13, %15 : vector<1x1x1xf32>
    %c0_16 = arith.constant 0 : index
    %c0_17 = arith.constant 0 : index
    %c0_18 = arith.constant 0 : index
    %17 = vector.load %arg6[%c0_16, %c0_17, %c0_18] : memref<1x1x1xf32, #tpu.memory_space<vmem>>, vector<1x1x1xf32>
    tpu.vector_store %arg6[%c0_16, %c0_17, %c0_18], %16 {strides = array<i32>} : memref<1x1x1xf32, #tpu.memory_space<vmem>>, vector<1x1x1xf32>,
    %cst_19 = arith.constant 0.000000e+00 : f32
    %18 = vector.broadcast %cst_19 : f32 to vector<1x8x32xf32>
    %19 = arith.cmpf oeq, %6, %18 : vector<1x8x32xf32>
    %cst_20 = arith.constant -1.000000e+04 : f32
    %20 = vector.broadcast %cst_20 : f32 to vector<1x8x32xf32>
    %21 = arith.select %19, %20, %3 : vector<1x8x32xi1>, vector<1x8x32xf32>
    %c0_21 = arith.constant 0 : index
    %c0_22 = arith.constant 0 : index
    %c0_23 = arith.constant 0 : index
    %22 = vector.load %arg7[%c0_21, %c0_22, %c0_23] : memref<1x1x32xf32, #tpu.memory_space<vmem>>, vector<1x1x32xf32>
    %cst_24 = arith.constant dense<0xFF800000> : vector<1x32xf32>
    %23 = vector.multi_reduction <maximumf>, %21, %cst_24 [1] : vector<1x8x32xf32> to vector<1x32xf32>
    %24 = vector.shape_cast %23 : vector<1x32xf32> to vector<1x1x32xf32>
    %25 = arith.maximumf %22, %24 : vector<1x1x32xf32>
    %c0_25 = arith.constant 0 : index
    %c0_26 = arith.constant 0 : index
    %c0_27 = arith.constant 0 : index
    %26 = vector.load %arg7[%c0_25, %c0_26, %c0_27] : memref<1x1x32xf32, #tpu.memory_space<vmem>>, vector<1x1x32xf32>
    tpu.vector_store %arg7[%c0_25, %c0_26, %c0_27], %25 {strides = array<i32>} : memref<1x1x32xf32, #tpu.memory_space<vmem>>, vector<1x1x32xf32>,
    %c0_i32_28 = arith.constant 0 : i32
    %27 = arith.cmpi eq, %arg1, %c0_i32_28 : i32
    %28 = arith.extui %27 : i1 to i32
    %c0_i32_29 = arith.constant 0 : i32
    %29 = arith.cmpi ne, %28, %c0_i32_29 : i32
    scf.if %29 {
      %c0_30 = arith.constant 0 : index
      %c0_31 = arith.constant 0 : index
      %c0_32 = arith.constant 0 : index
      %30 = vector.load %arg6[%c0_30, %c0_31, %c0_32] : memref<1x1x1xf32, #tpu.memory_space<vmem>>, vector<1x1x1xf32>
      %cst_33 = arith.constant 9.99999971E-10 : f32
      %31 = vector.broadcast %cst_33 : f32 to vector<1x1x1xf32>
      %32 = arith.maximumf %30, %31 : vector<1x1x1xf32>
      %c0_34 = arith.constant 0 : index
      %c0_35 = arith.constant 0 : index
      %c0_36 = arith.constant 0 : index
      %33 = vector.load %arg5[%c0_34, %c0_35, %c0_36] : memref<1x1x32xf32, #tpu.memory_space<vmem>>, vector<1x1x32xf32>
      %34 = vector.broadcast %32 : vector<1x1x1xf32> to vector<1x1x32xf32>
      %35 = arith.divf %33, %34 : vector<1x1x32xf32>
      %c0_37 = arith.constant 0 : index
      %c0_38 = arith.constant 0 : index
      %c0_39 = arith.constant 0 : index
      %36 = vector.load %arg4[%c0_37, %c0_38, %c0_39] : memref<1x2x32xf32, #tpu.memory_space<vmem>>, vector<1x1x32xf32>
      tpu.vector_store %arg4[%c0_37, %c0_38, %c0_39], %35 {strides = array<i32>} : memref<1x2x32xf32, #tpu.memory_space<vmem>>, vector<1x1x32xf32>,
      %c0_40 = arith.constant 0 : index
      %c0_41 = arith.constant 0 : index
      %c0_42 = arith.constant 0 : index
      %37 = vector.load %arg7[%c0_40, %c0_41, %c0_42] : memref<1x1x32xf32, #tpu.memory_space<vmem>>, vector<1x1x32xf32>
      %c0_43 = arith.constant 0 : index
      %c1 = arith.constant 1 : index
      %c0_44 = arith.constant 0 : index
      %38 = vector.load %arg4[%c0_43, %c1, %c0_44] : memref<1x2x32xf32, #tpu.memory_space<vmem>>, vector<1x1x32xf32>
      tpu.vector_store %arg4[%c0_43, %c1, %c0_44], %37 {strides = array<i32>} : memref<1x2x32xf32, #tpu.memory_space<vmem>>, vector<1x1x32xf32>,
    } else {
    }
    return
  }
  func.func @transform_0(%arg0: i32, %arg1: i32) -> (i32, i32, i32) {
    %c0_i32 = arith.constant 0 : i32
    %c0_i32_0 = arith.constant 0 : i32
    return %arg0, %arg1, %c0_i32 : i32, i32, i32
  }
  func.func @transform_1(%arg0: i32, %arg1: i32) -> (i32, i32, i32) {
    %c0_i32 = arith.constant 0 : i32
    %c0_i32_0 = arith.constant 0 : i32
    return %arg0, %arg1, %c0_i32 : i32, i32, i32
  }
  func.func @transform_2(%arg0: i32, %arg1: i32) -> (i32, i32, i32) {
    %c0_i32 = arith.constant 0 : i32
    %c0_i32_0 = arith.constant 0 : i32
    %c0_i32_1 = arith.constant 0 : i32
    return %arg0, %c0_i32, %c0_i32_0 : i32, i32, i32
  }
}

</mosaic_0001>

<llo_original>
// kernel: tpu_custom_call.1
$region0: #{tpu_custom_call.1}
  #allocation0 [shape = 'u32[]', space=smem, size = 0x4, offset = 0x4, fixed_abs, tag = 'smem constant byte address 0x4 - core index']
  #allocation1 [shape = 'u32[144,128]{1,0:T(1,128)}', space=vmem, size = 0x12000, scoped, tag = 'internal scratch']
  #allocation2 [shape = 'f32[1,1,32]{2,1,0:T(1,128)}', space=vmem, size = 0x200, scoped, tag = 'scratch operand']
  #allocation3 [shape = 'f32[1,1,1]{2,1,0:T(1,128)}', space=vmem, size = 0x200, scoped, tag = 'scratch operand']
  #allocation4 [shape = 'f32[1,1,32]{2,1,0:T(1,128)}', space=vmem, size = 0x200, scoped, tag = 'scratch operand']
  %s0 = inlined_call_operand.vmem [shape: f32[2,8,32], index: 0, kind: input, shape index: {}]
  %s1 = inlined_call_operand.vmem [shape: f32[2,8,1], index: 1, kind: input, shape index: {}]
  %s2 = inlined_call_operand.hbm [shape: f32[2,2,32], index: 2, kind: output, shape index: {}]
  %s3 = sld [smem:[#allocation0]]
  $region49: #{tpu_custom_call.1} parent=0
    _
  %s5 = ssub.s32 1, %s3
  %s6 = scalar_select 0, %s5, %s3
  $region1: #{tpu_custom_call.1} parent=0
    #allocation5 [shape = 'u8[2048]{0}', space=vmem, size = 0x800, scoped, tag = 'output window, operand 0']
    #allocation6 [shape = 's32[2]{0}', space=sflag, size = 0x8, scoped, tag = 'scoped memory for tpu_custom_call.1']
    %7 = vsyncpa [#allocation6], 0
    %s8 = scalar_lea.sflag [#allocation6], 1
    %9 = vsyncpa %s8, 0
    loop: start=0, step=1, limit=4
    $region2: #{tpu_custom_call.1} parent=1 // loop_pre_header
      _
    $region3: #{tpu_custom_call.1} parent=1 // loop_header
      %s11 = sphi 0, %s15
      %p12 = scmp.ge.s32.totalorder %s11, 4
      %s18 = sphi 0, %s30
      %s19 = sphi 0, %s26
      %s20 = sphi 0, %s18
      %s21 = sphi 0, %s19
      %s22 = sphi 0, %s20
      %s23 = sphi 0, %s21
      %s35 = sphi 0, %s37
      %s38 = sphi 0, %s35
      %s39 = sphi 0, %s38
      %s55 = sphi 0, %s39
      %s63 = sphi 0, %s65
      %s66 = sphi 0, %s63
      %s67 = sphi 0, %s66
      %s83 = sphi 0, %s67
      %s89 = sphi 0, %s91
      %s92 = sphi 0, %s89
      %s93 = sphi 0, %s92
      %s109 = sphi 0, %s93
    $region4: #{tpu_custom_call.1} parent=1 // loop_header_branch
      %14 = sbr.rel (%p12) target = $region8
    $region5: #{tpu_custom_call.1} parent=1 // loop_body
      %s16 = ssub.s32 %s11, 1
      %s17 = ssub.s32 %s11, 2
      %s24 = sadd.s32 1, %s19
      %p25 = scmp.ge.s32.totalorder %s24, 1
      %s26 = scalar_select %p25, 0, %s24
      %s27 = sadd.s32 1, %s18
      %s28 = scalar_select %p25, %s27, %s18
      %p29 = scmp.ge.s32.totalorder %s28, 2
      %s30 = scalar_select %p29, 0, %s28
      %s31 = ssub.s32 %s18, %s30
      %s32 = ssub.s32 %s19, %s26
      %s33 = sor.u32 %s31, %s32
      %p34 = scmp.eq.s32.totalorder %s33, 0
      %s36 = sadd.s32 %s35, 1
      %s37 = scalar_select %p34, %s35, %s36
      %p40 = pneg %p34
      %p41 = scmp.eq.s32.totalorder %s11, 1
      %p42 = por %p40, %p41
      %p43 = scmp.ne.s32.totalorder %s35, %s38
      %p44 = scmp.eq.s32.totalorder %s11, 0
      %p45 = por %p43, %p44
      %p46 = scmp.ne.s32.totalorder %s35, %s38
      %p47 = scmp.eq.s32.totalorder %s16, 1
      %p48 = por %p46, %p47
      %p49 = scmp.ne.s32.totalorder %s38, %s39
      %p50 = scmp.eq.s32.totalorder %s16, 0
      %p51 = por %p49, %p50
      %p52 = scmp.ne.s32.totalorder %s38, %s39
      %p53 = scmp.eq.s32.totalorder %s17, 1
      %p54 = por %p52, %p53
      %p56 = scmp.ne.s32.totalorder %s39, %s55
      %p57 = scmp.eq.s32.totalorder %s17, 0
      %p58 = por %p56, %p57
      %s59 = ssub.s32 %s18, %s30
      %s60 = ssub.s32 %s19, %s26
      %s61 = sor.u32 %s59, %s60
      %p62 = scmp.eq.s32.totalorder %s61, 0
      %s64 = sadd.s32 %s63, 1
      %s65 = scalar_select %p62, %s63, %s64
      %p68 = pneg %p62
      %p69 = scmp.eq.s32.totalorder %s11, 1
      %p70 = por %p68, %p69
      %p71 = scmp.ne.s32.totalorder %s63, %s66
      %p72 = scmp.eq.s32.totalorder %s11, 0
      %p73 = por %p71, %p72
      %p74 = scmp.ne.s32.totalorder %s63, %s66
      %p75 = scmp.eq.s32.totalorder %s16, 1
      %p76 = por %p74, %p75
      %p77 = scmp.ne.s32.totalorder %s66, %s67
      %p78 = scmp.eq.s32.totalorder %s16, 0
      %p79 = por %p77, %p78
      %p80 = scmp.ne.s32.totalorder %s66, %s67
      %p81 = scmp.eq.s32.totalorder %s17, 1
      %p82 = por %p80, %p81
      %p84 = scmp.ne.s32.totalorder %s67, %s83
      %p85 = scmp.eq.s32.totalorder %s17, 0
      %p86 = por %p84, %p85
      %s87 = ssub.s32 %s18, %s30
      %p88 = scmp.eq.s32.totalorder %s87, 0
      %s90 = sadd.s32 %s89, 1
      %s91 = scalar_select %p88, %s89, %s90
      %p94 = pneg %p88
      %p95 = scmp.eq.s32.totalorder %s11, 1
      %p96 = por %p94, %p95
      %p97 = scmp.ne.s32.totalorder %s89, %s92
      %p98 = scmp.eq.s32.totalorder %s11, 0
      %p99 = por %p97, %p98
      %p100 = scmp.ne.s32.totalorder %s89, %s92
      %p101 = scmp.eq.s32.totalorder %s16, 1
      %p102 = por %p100, %p101
      %p103 = scmp.ne.s32.totalorder %s92, %s93
      %p104 = scmp.eq.s32.totalorder %s16, 0
      %p105 = por %p103, %p104
      %p106 = scmp.ne.s32.totalorder %s92, %s93
      %p107 = scmp.eq.s32.totalorder %s17, 1
      %p108 = por %p106, %p107
      %p110 = scmp.ne.s32.totalorder %s93, %s109
      %p111 = scmp.eq.s32.totalorder %s17, 0
      %p112 = por %p110, %p111
      %p113 = scmp.le.s32.totalorder 1, %s11
      %p114 = scmp.lt.s32.totalorder %s11, 3
      %p115 = pnand %p113, %p114
      %p116 = pneg %p115
      // Predicated region
      $region9: #{tpu_custom_call.1} parent=5 // pred_check
        _
      $region10: #{tpu_custom_call.1} parent=5 // pred_check_branch
        %118 = sbr.rel (%p115) target = $region12
      $region11: #{tpu_custom_call.1} parent=5 // pred_region
        %s119 = ssub.s32 %s11, 1
      $region12: #{tpu_custom_call.1} parent=5 // pred_fallthru
        _
      %p120 = scmp.lt.s32.totalorder %s11, 2
      // Predicated region
      $region13: #{tpu_custom_call.1} parent=5 // pred_check
        %p121 = pneg %p120
      $region14: #{tpu_custom_call.1} parent=5 // pred_check_branch
        %123 = sbr.rel (%p121) target = $region16
      $region15: #{tpu_custom_call.1} parent=5 // pred_region
        // Predicated region
        $region17: #{tpu_custom_call.1} parent=15 // pred_check
          %p124 = pneg %p45
        $region18: #{tpu_custom_call.1} parent=15 // pred_check_branch
          %126 = sbr.rel (%p124) target = $region20
        $region19: #{tpu_custom_call.1} parent=15 // pred_region
          %p127 = scmp.lt.s32.totalorder %s18, 1
          %s128 = scalar_select %p127, %s18, 1
          %p129 = scmp.lt.s32.totalorder %s19, 0
          %s130 = scalar_select %p129, %s19, 0
          %s131 = sadd.s32 %s130, %s128
          %s132 = smul.addr %s131, 8
          %s133 = scalar_lea.vmem %s0, %s132
        $region20: #{tpu_custom_call.1} parent=15 // pred_fallthru
          _
        // Predicated region
        $region21: #{tpu_custom_call.1} parent=15 // pred_check
          %p134 = pneg %p73
        $region22: #{tpu_custom_call.1} parent=15 // pred_check_branch
          %136 = sbr.rel (%p134) target = $region24
        $region23: #{tpu_custom_call.1} parent=15 // pred_region
          %p137 = scmp.lt.s32.totalorder %s18, 1
          %s138 = scalar_select %p137, %s18, 1
          %p139 = scmp.lt.s32.totalorder %s19, 0
          %s140 = scalar_select %p139, %s19, 0
          %s141 = sadd.s32 %s140, %s138
          %s142 = smul.addr %s141, 8
          %s143 = scalar_lea.vmem %s1, %s142
        $region24: #{tpu_custom_call.1} parent=15 // pred_fallthru
          _
      $region16: #{tpu_custom_call.1} parent=5 // pred_fallthru
        _
      %p144 = scmp.le.s32.totalorder 1, %s11
      %p145 = scmp.lt.s32.totalorder %s11, 3
      %p146 = pnand %p144, %p145
      %p147 = pneg %p146
      // Predicated region
      $region25: #{tpu_custom_call.1} parent=5 // pred_check
        _
      $region26: #{tpu_custom_call.1} parent=5 // pred_check_branch
        %149 = sbr.rel (%p146) target = $region28
      $region27: #{tpu_custom_call.1} parent=5 // pred_region
        %s150 = ssub.s32 %s11, 1
        %p151 = scmp.lt.s32.totalorder %s20, 1
        %s152 = scalar_select %p151, %s20, 1
        %p153 = scmp.lt.s32.totalorder %s21, 0
        %s154 = scalar_select %p153, %s21, 0
        %s155 = sadd.s32 %s154, %s152
        %s156 = smul.addr %s155, 8
        %s157 = scalar_lea.vmem %s0, %s156
        %p158 = pneg %p51
        %p159 = pneg %p48
        %p160 = scmp.lt.s32.totalorder %s20, 1
        %s161 = scalar_select %p160, %s20, 1
        %p162 = scmp.lt.s32.totalorder %s21, 0
        %s163 = scalar_select %p162, %s21, 0
        %s164 = sadd.s32 %s163, %s161
        %s165 = smul.addr %s164, 8
        %s166 = scalar_lea.vmem %s1, %s165
        %p167 = pneg %p79
        %p168 = pneg %p76
        %p169 = pneg %p105
        %p170 = pneg %p102
        %s171 = sand.u32 %s92, 1
        %s172 = scalar_lea.sflag [#allocation6], %s171
        %s173 = sand.u32 %s92, 1
        %s174 = smul.addr %s173, 2
        %s175 = scalar_lea.vmem [#allocation5], %s174
        %p176 = scmp.lt.s32.totalorder %s20, 1
        %s177 = scalar_select %p176, %s20, 1
        %p178 = scmp.lt.s32.totalorder %s21, 0
        %s179 = scalar_select %p178, %s21, 0
        %s180 = sadd.s32 %s179, %s177
        %s181 = smul.addr %s180, 8
        %s182 = scalar_lea.vmem %s0, %s181
        %p183 = scmp.lt.s32.totalorder %s20, 1
        %s184 = scalar_select %p183, %s20, 1
        %p185 = scmp.lt.s32.totalorder %s21, 0
        %s186 = scalar_select %p185, %s21, 0
        %s187 = sadd.s32 %s186, %s184
        %s188 = smul.addr %s187, 8
        %s189 = scalar_lea.vmem %s1, %s188
        %p190 = scmp.eq.s32.totalorder %s21, 0
        // Predicated region
        $region29: #{tpu_custom_call.1} parent=27 // pred_check
          %p191 = pneg %p190
        $region30: #{tpu_custom_call.1} parent=27 // pred_check_branch
          %193 = sbr.rel (%p191) target = $region32
        $region31: #{tpu_custom_call.1} parent=27 // pred_region
          %vm194 = vcmask 253952
          %195 = vst.msk [vmem:[#allocation2] sm:$0x1] %vm194, 0.0
          %vm196 = vcmask 0
          %197 = vst.msk [vmem:[#allocation3] sm:$0x1] %vm196, 0.0
          %198 = vst.msk [vmem:[#allocation4] sm:$0x1] %vm194, -inf
        $region32: #{tpu_custom_call.1} parent=27 // pred_fallthru
          _
        %v199 = vld [vmem:[%s182] sm:$0xff]
        %v200 = vld [vmem:[%s189] sm:$0xff]
        %202 = vset.pattern.permute.xlu0 0
        %203 = vperm.xlu0 %202, %v200
        %v204 = vpop.permute.xlu0 %203
        %v206 = vld [vmem:[#allocation2] sm:$0x1]
        %v207 = vmul.f32 %v199, %v204
        %vm208 = vcmask 261120
        %v209 = vsel %vm208, %v207, 0.0
        %v210 = vrot.slane %v209, 4
        %v211 = vadd.f32 %v209, %v210
        %v212 = vrot.slane %v211, 2
        %v213 = vadd.f32 %v211, %v212
        %v214 = vrot.slane %v213, 1
        %v215 = vadd.f32 %v213, %v214
        %v216 = vadd.f32 %v206, %v215
        %vm217 = vcmask 253952
        %218 = vst.msk [vmem:[#allocation2] sm:$0x1] %vm217, %v216
        %v219 = vld [vmem:[#allocation3] sm:$0x1]
        %vm220 = vcmask 7168
        %v221 = vsel %vm220, %v200, 0.0
        %v222 = vrot.slane %v221, 4
        %v223 = vadd.f32 %v221, %v222
        %v224 = vrot.slane %v223, 2
        %v225 = vadd.f32 %v223, %v224
        %v226 = vrot.slane %v225, 1
        %v227 = vadd.f32 %v225, %v226
        %v228 = vadd.f32 %v219, %v227
        %vm229 = vcmask 0
        %230 = vst.msk [vmem:[#allocation3] sm:$0x1] %vm229, %v228
        %vm231 = vcmp.eq.f32.partialorder %v204, 0.0
        %v232 = vsel %vm231, -10000.0, %v199
        %v233 = vld [vmem:[#allocation4] sm:$0x1]
        %v234 = vsel %vm208, %v232, -inf
        %v235 = vrot.slane %v234, 4
        %v236 = vmax.f32 %v234, %v235
        %v237 = vrot.slane %v236, 2
        %v238 = vmax.f32 %v236, %v237
        %v239 = vrot.slane %v238, 1
        %v240 = vmax.f32 %v238, %v239
        %v241 = vmax.f32 %v233, %v240
        %242 = vst.msk [vmem:[#allocation4] sm:$0x1] %vm217, %v241
        // Predicated region
        $region33: #{tpu_custom_call.1} parent=27 // pred_check
          %p243 = pneg %p190
        $region34: #{tpu_custom_call.1} parent=27 // pred_check_branch
          %245 = sbr.rel (%p243) target = $region36
        $region35: #{tpu_custom_call.1} parent=27 // pred_region
          %v246 = vld [vmem:[#allocation3] sm:$0x1]
          %v247 = vmax.f32 %v246, 1e-09
          %v248 = vld [vmem:[#allocation2] sm:$0x1]
          %250 = vset.pattern.permute.xlu0 0
          %251 = vperm.xlu0 %250, %v247
          %v252 = vpop.permute.xlu0 %251
          %v254 = vlaneseq
          %v255 = vshrl.u32 %v254, 7
          %v256 = vsub.s32 0, %v255
          %v257 = vrot.slane %v252, %v256
          %v258 = vrcp.pop %v257
          %v259 = vmul.f32 %v248, %v258
          %260 = vst.msk [vmem:[%s175] sm:$0x1] %vm217, %v259
          %v261 = vld [vmem:[#allocation4] sm:$0x1]
          %262 = vst.msk [vmem:[%s175 + $0x1] sm:$0x1] %vm217, %v261
        $region36: #{tpu_custom_call.1} parent=27 // pred_fallthru
          _
        %s263 = sand.u32 %s92, 1
        %s264 = scalar_lea.sflag [#allocation6], %s263
        %s265 = sand.u32 %s92, 1
        %s266 = smul.addr %s265, 2
        %s267 = scalar_lea.vmem [#allocation5], %s266
        // Predicated region
        $region37: #{tpu_custom_call.1} parent=27 // pred_check
          %p268 = pneg %p102
        $region38: #{tpu_custom_call.1} parent=27 // pred_check_branch
          %270 = sbr.rel (%p268) target = $region40
        $region39: #{tpu_custom_call.1} parent=27 // pred_region
          %s272 = ssub.s32 32, 32
          %273 = vsyncadd %s264, %s272
          %s274 = smul.addr %s20, 32
          %s275 = scalar_lea.hbm %s2, %s274
          %s277 = sshll.u32 %s267, 4
          %s278 = int_to_ptr.vmem [resolvable:$true] %s277
          %280 = dma.vmem_to_hbm [thread:$0]  %s278, 32, %s275, %s264
        $region40: #{tpu_custom_call.1} parent=27 // pred_fallthru
          _
      $region28: #{tpu_custom_call.1} parent=5 // pred_fallthru
        _
      %p281 = scmp.le.s32.totalorder 2, %s11
      // Predicated region
      $region41: #{tpu_custom_call.1} parent=5 // pred_check
        %p282 = pneg %p281
      $region42: #{tpu_custom_call.1} parent=5 // pred_check_branch
        %284 = sbr.rel (%p282) target = $region44
      $region43: #{tpu_custom_call.1} parent=5 // pred_region
        %s285 = ssub.s32 %s11, 2
        // Predicated region
        $region45: #{tpu_custom_call.1} parent=43 // pred_check
          %p286 = pneg %p108
        $region46: #{tpu_custom_call.1} parent=43 // pred_check_branch
          %288 = sbr.rel (%p286) target = $region48
        $region47: #{tpu_custom_call.1} parent=43 // pred_region
          %s289 = sand.u32 %s93, 1
          %s290 = scalar_lea.sflag [#allocation6], %s289
          %s291 = sand.u32 %s93, 1
          %s292 = smul.addr %s291, 2
          %s293 = scalar_lea.vmem [#allocation5], %s292
          %294 = dma.done %s290, 32
        $region48: #{tpu_custom_call.1} parent=43 // pred_fallthru
          _
      $region44: #{tpu_custom_call.1} parent=5 // pred_fallthru
        _
    $region6: #{tpu_custom_call.1} parent=1 // loop_footer
      %s15 = sadd.s32 1, %s11
    $region7: #{tpu_custom_call.1} parent=1 // loop_footer_branch
      %10 = sbr.rel target = $region3
    $region8: #{tpu_custom_call.1} parent=1 // loop_exit
      _
    %295 = vsyncpa [#allocation6], 1
    %s296 = scalar_lea.sflag [#allocation6], 1
    %297 = vsyncpa %s296, 1

</llo_original>
